<compile_context>
chip_gen: v5e
topology: v5e:2x2
jax: 0.10.0
libtpu: 0.0.40
codegen_flags: <defaults>
</compile_context>

<pallas_src>
import functools

import jax
import jax.numpy as jnp
from jax.experimental import pallas as pl
from jax.experimental.pallas import tpu as pltpu


def _vq_tile_kernel(x_ref, e_ref, e2_ref, q_ref, enc_ref, idx_ref, psq_ref,
                    pcnt_ref, *, n_valid, ragged, use_bf16_matmul):
    """Processes one tile of TN input rows against the full codebook."""
    i = pl.program_id(0)

    x = x_ref[...]                       # (TN, D) f32 input rows
    e = e_ref[...]                       # (K, D)  f32 codebook (grid-invariant)
    e2 = e2_ref[...]                     # (1, K)  f32 |e|^2 (precomputed once)
    tn, _ = x.shape
    k_dim = e.shape[0]

    # ---- pairwise distances in argmin-equivalent form --------------------
    # full distance = |x|^2 + |e|^2 - 2 x.e^T ; |x|^2 is constant per row so
    # it is dropped for the argmin (the MSE below uses x directly).
    dims = (((1,), (1,)), ((), ()))      # contract over D of both operands
    if use_bf16_matmul:
        xe = jax.lax.dot_general(x.astype(jnp.bfloat16),
                                 e.astype(jnp.bfloat16),
                                 dims, preferred_element_type=jnp.float32)
    else:
        xe = jax.lax.dot_general(x, e, dims,
                                 preferred_element_type=jnp.float32)
    dist = e2 - 2.0 * xe                 # (TN, K)

    # ---- argmin over the codebook (first minimal index, torch semantics) --
    col = jax.lax.broadcasted_iota(jnp.int32, (tn, k_dim), 1)
    dmin = jnp.min(dist, axis=1, keepdims=True)
    idx = jnp.min(jnp.where(dist == dmin, col, k_dim), axis=1, keepdims=True)
    enc = (col == idx).astype(jnp.float32)            # (TN, K) one-hot

    # ---- quantize: one_hot @ codebook (f32 so codebook rows are exact) ----
    quant = jnp.dot(enc, e, preferred_element_type=jnp.float32)   # (TN, D)

    q_ref[...] = quant                   # == inputs + sg(quantized - inputs)
    enc_ref[...] = enc.astype(enc_ref.dtype)
    idx_ref[...] = idx                   # (TN, 1) int32

    # ---- per-tile partial statistics (reduced in the wrapper) -------------
    diff = quant - x
    if ragged:
        # Only the last tile can contain padded rows; mask them out of the
        # MSE sum and the code counts.  (ragged is a trace-time Python bool,
        # so aligned shapes pay zero cost for this.)
        row = jax.lax.broadcasted_iota(jnp.int32, (tn, 1), 0) + i * tn
        valid = (row < n_valid).astype(jnp.float32)   # (TN, 1)
        diff = diff * valid
        cnt = jnp.sum(enc * valid, axis=0, keepdims=True)          # (1, K)
    else:
        cnt = jnp.sum(enc, axis=0, keepdims=True)                  # (1, K)

    psq_ref[...] = jnp.reshape(jnp.sum(diff * diff), (1, 1, 1))
    pcnt_ref[...] = jnp.reshape(cnt, (1, 1, k_dim))


def vector_quantizer_ema_forward(inputs, embedding_weight, commitment_cost, *,
                                 tile_n=512, use_bf16_matmul=False,
                                 encodings_dtype=jnp.float32):
    """Inference forward of VectorQuantizerEMA.

    inputs:            (B, T, D) float32
    embedding_weight:  (K, D)    float32
    returns: (loss, quantized(B,T,D), perplexity, encodings(N,K), indices(B,T))
    """
    B, T, D = inputs.shape
    K = embedding_weight.shape[0]
    N = B * T

    flat = inputs.reshape(N, D).astype(jnp.float32)
    emb = embedding_weight.astype(jnp.float32)

    # Row tile: a multiple of 128, at most tile_n; pad N up to a whole number
    # of tiles (padded rows are masked out of loss / counts in the kernel).
    tn = min(int(tile_n), pl.cdiv(N, 128) * 128)
    tn = max(128, (tn // 128) * 128)
    num_tiles = pl.cdiv(N, tn)
    n_pad = num_tiles * tn
    if n_pad != N:
        flat = jnp.pad(flat, ((0, n_pad - N), (0, 0)))

    # Hoisted codebook constant: |e|^2 computed once, passed as a
    # grid-invariant (1, K) block instead of being recomputed every tile.
    e2 = jnp.sum(emb * emb, axis=1)[None, :]

    kernel = functools.partial(
        _vq_tile_kernel,
        n_valid=N,
        ragged=(n_pad != N),
        use_bf16_matmul=use_bf16_matmul,
    )

    out_shapes = (
        jax.ShapeDtypeStruct((n_pad, D), jnp.float32),         # quantized
        jax.ShapeDtypeStruct((n_pad, K), encodings_dtype),     # one-hot encodings
        jax.ShapeDtypeStruct((n_pad, 1), jnp.int32),           # encoding indices
        jax.ShapeDtypeStruct((num_tiles, 1, 1), jnp.float32),  # per-tile sum((q-x)^2)
        jax.ShapeDtypeStruct((num_tiles, 1, K), jnp.float32),  # per-tile code counts
    )

    q, enc, idx, psq, pcnt = pl.pallas_call(
        kernel,
        grid=(num_tiles,),
        in_specs=[
            pl.BlockSpec((tn, D), lambda i: (i, 0)),     # input rows (tiled)
            pl.BlockSpec((K, D), lambda i: (0, 0)),      # codebook (grid-invariant)
            pl.BlockSpec((1, K), lambda i: (0, 0)),      # |e|^2   (grid-invariant)
        ],
        out_specs=(
            pl.BlockSpec((tn, D), lambda i: (i, 0)),
            pl.BlockSpec((tn, K), lambda i: (i, 0)),
            pl.BlockSpec((tn, 1), lambda i: (i, 0)),
            pl.BlockSpec((1, 1, 1), lambda i: (i, 0, 0)),
            pl.BlockSpec((1, 1, K), lambda i: (i, 0, 0)),
        ),
        out_shape=out_shapes,
        compiler_params=pltpu.CompilerParams(
            # No cross-step state (per-tile partial outputs), so the N axis is
            # genuinely parallel -> sharded across the 2 TCs on v7x.
            dimension_semantics=("parallel",),
            vmem_limit_bytes=32 * 1024 * 1024,
        ),
    )(flat, emb, e2)

    quantized = q[:N].reshape(B, T, D)
    encodings = enc[:N]
    encoding_indices = idx[:N, 0].reshape(B, T)

    # Tiny final reductions over the per-tile partials (pure XLA).
    total_sq = jnp.sum(psq)
    loss = commitment_cost * total_sq / (N * D)
    counts = jnp.sum(pcnt, axis=(0, 1))                 # (K,)
    avg_probs = counts / N
    perplexity = jnp.exp(-jnp.sum(avg_probs * jnp.log(avg_probs + 1e-10)))
    return loss, quantized, perplexity, encodings, encoding_indices


def _reference_forward(inputs, embedding_weight, commitment_cost):
    """Pure-JAX reference mirroring the PyTorch eval forward.

    Note: the argmin is taken over (|e|^2 - 2 x.e) -- the per-row |x|^2 term
    is a constant offset that provably does not change the argmin; using the
    same reduced form as the kernel avoids spurious 1-ulp tie-break flips in
    the comparison while keeping torch.argmin (first-index) semantics.
    """
    B, T, D = inputs.shape
    K = embedding_weight.shape[0]
    flat = inputs.reshape(-1, D)
    dist = jnp.sum(embedding_weight ** 2, axis=1) - 2.0 * flat @ embedding_weight.T
    idx = jnp.argmin(dist, axis=1)
    enc = jax.nn.one_hot(idx, K, dtype=jnp.float32)
    quant = enc @ embedding_weight
    loss = commitment_cost * jnp.mean((quant - flat) ** 2)
    avg_probs = jnp.mean(enc, axis=0)
    ppl = jnp.exp(-jnp.sum(avg_probs * jnp.log(avg_probs + 1e-10)))
    return loss, quant.reshape(B, T, D), ppl, enc, idx.reshape(B, T)


if __name__ == "__main__":
    # Module hyperparameters (synthetic, deterministic, small shapes).
    num_embeddings = 128      # K
    embedding_dim = 32        # D
    commitment_cost = 0.25

    B, T = 2, 8               # input is (B, T, D) -> flat (16, 32)

    key = jax.random.PRNGKey(0)
    k_in, k_emb = jax.random.split(key)

    inputs = jax.random.normal(k_in, (B, T, embedding_dim), dtype=jnp.float32)
    # Match PyTorch init: uniform(-1/num_embeddings, 1/embedding_dim)
    embedding_weight = jax.random.uniform(
        k_emb, (num_embeddings, embedding_dim),
        minval=-1.0 / num_embeddings, maxval=1.0 / embedding_dim,
        dtype=jnp.float32)

    loss, quantized, perplexity, encodings, encoding_indices = jax.block_until_ready(
        vector_quantizer_ema_forward(inputs, embedding_weight, commitment_cost))

    # Sanity-check against a pure-JAX reference.
    r_loss, r_quant, r_ppl, r_enc, r_idx = _reference_forward(
        inputs, embedding_weight, commitment_cost)
    assert quantized.shape == (B, T, embedding_dim)
    assert encodings.shape == (B * T, num_embeddings)
    assert encoding_indices.shape == (B, T)
    assert jnp.array_equal(encoding_indices, r_idx.astype(encoding_indices.dtype))
    assert jnp.allclose(encodings.astype(jnp.float32), r_enc)
    assert jnp.allclose(quantized, r_quant, atol=1e-5)
    assert jnp.allclose(loss, r_loss, atol=1e-5)
    assert jnp.allclose(perplexity, r_ppl, atol=1e-4)

    print("KERNEL_OK")
</pallas_src>

<mosaic_0001>
module attributes {stable_mosaic.version = 11 : i64} {
  func.func @_vq_tile_kernel(%arg0: i32, %arg1: memref<128x32xf32, #tpu.memory_space<vmem>>, %arg2: memref<128x32xf32, #tpu.memory_space<vmem>>, %arg3: memref<1x128xf32, #tpu.memory_space<vmem>>, %arg4: memref<128x32xf32, #tpu.memory_space<vmem>>, %arg5: memref<128x128xf32, #tpu.memory_space<vmem>>, %arg6: memref<128x1xi32, #tpu.memory_space<vmem>>, %arg7: memref<1x1x1xf32, #tpu.memory_space<vmem>>, %arg8: memref<1x1x128xf32, #tpu.memory_space<vmem>>) attributes {dimension_semantics = [#tpu.dimension_semantics<parallel>], iteration_bounds = array<i64: 1>, scalar_prefetch = 0 : i64, scratch_operands = 0 : i64, tpu.core_type = #tpu.core_type<tc>, window_params = [{transform_indices = @transform_0, window_bounds = array<i64: 128, 32>}, {pipeline_mode = #tpu.pipeline_mode<synchronous>, transform_indices = @transform_1, window_bounds = array<i64: 128, 32>}, {pipeline_mode = #tpu.pipeline_mode<synchronous>, transform_indices = @transform_2, window_bounds = array<i64: 1, 128>}, {transform_indices = @transform_3, window_bounds = array<i64: 128, 32>}, {transform_indices = @transform_4, window_bounds = array<i64: 128, 128>}, {transform_indices = @transform_5, window_bounds = array<i64: 128, 1>}, {transform_indices = @transform_6, window_bounds = array<i64: 1, 1, 1>}, {transform_indices = @transform_7, window_bounds = array<i64: 1, 1, 128>}]} {
    %c0 = arith.constant 0 : index
    %c0_0 = arith.constant 0 : index
    %0 = vector.load %arg1[%c0, %c0_0] : memref<128x32xf32, #tpu.memory_space<vmem>>, vector<128x32xf32>
    %c0_1 = arith.constant 0 : index
    %c0_2 = arith.constant 0 : index
    %1 = vector.load %arg2[%c0_1, %c0_2] : memref<128x32xf32, #tpu.memory_space<vmem>>, vector<128x32xf32>
    %c0_3 = arith.constant 0 : index
    %c0_4 = arith.constant 0 : index
    %2 = vector.load %arg3[%c0_3, %c0_4] : memref<1x128xf32, #tpu.memory_space<vmem>>, vector<1x128xf32>
    %cst = arith.constant dense<0.000000e+00> : vector<128x128xf32>
    %3 = tpu.matmul %0, %1, %cst {dimension_numbers = #tpu.dot_dimension_numbers<[1], [1], [0], [0], [0, 0, 1, 0], [], []>} : vector<128x32xf32>, vector<128x32xf32>, vector<128x128xf32> -> vector<128x128xf32>
    %cst_5 = arith.constant 2.000000e+00 : f32
    %4 = vector.broadcast %cst_5 : f32 to vector<128x128xf32>
    %5 = arith.mulf %4, %3 : vector<128x128xf32>
    %6 = vector.broadcast %2 : vector<1x128xf32> to vector<128x128xf32>
    %7 = arith.subf %6, %5 : vector<128x128xf32>
    %8 = tpu.iota {dimensions = array<i32: 1>} : vector<128x128xi32>
    %cst_6 = arith.constant dense<0x7F800000> : vector<128xf32>
    %9 = vector.multi_reduction <minimumf>, %7, %cst_6 [1] : vector<128x128xf32> to vector<128xf32>
    %10 = vector.shape_cast %9 : vector<128xf32> to vector<128x1xf32>
    %11 = vector.broadcast %10 : vector<128x1xf32> to vector<128x128xf32>
    %12 = arith.cmpf oeq, %7, %11 : vector<128x128xf32>
    %c128_i32 = arith.constant 128 : i32
    %13 = vector.broadcast %c128_i32 : i32 to vector<128x128xi32>
    %14 = arith.select %12, %8, %13 : vector<128x128xi1>, vector<128x128xi32>
    %cst_7 = arith.constant dense<2147483647> : vector<128xi32>
    %15 = vector.multi_reduction <minsi>, %14, %cst_7 [1] : vector<128x128xi32> to vector<128xi32>
    %16 = vector.shape_cast %15 : vector<128xi32> to vector<128x1xi32>
    %17 = vector.broadcast %16 : vector<128x1xi32> to vector<128x128xi32>
    %18 = arith.cmpi eq, %8, %17 : vector<128x128xi32>
    %19 = arith.extui %18 : vector<128x128xi1> to vector<128x128xi32>
    %20 = arith.sitofp %19 : vector<128x128xi32> to vector<128x128xf32>
    %cst_8 = arith.constant dense<0.000000e+00> : vector<128x32xf32>
    %21 = tpu.matmul %20, %1, %cst_8 {dimension_numbers = #tpu.dot_dimension_numbers<[1], [0], [0], [1], [0, 0, 1, 1], [], []>} : vector<128x128xf32>, vector<128x32xf32>, vector<128x32xf32> -> vector<128x32xf32>
    %c0_9 = arith.constant 0 : index
    %c0_10 = arith.constant 0 : index
    %22 = vector.load %arg4[%c0_9, %c0_10] : memref<128x32xf32, #tpu.memory_space<vmem>>, vector<128x32xf32>
    tpu.vector_store %arg4[%c0_9, %c0_10], %21 {strides = array<i32>} : memref<128x32xf32, #tpu.memory_space<vmem>>, vector<128x32xf32>,
    %c0_11 = arith.constant 0 : index
    %c0_12 = arith.constant 0 : index
    %23 = vector.load %arg5[%c0_11, %c0_12] : memref<128x128xf32, #tpu.memory_space<vmem>>, vector<128x128xf32>
    tpu.vector_store %arg5[%c0_11, %c0_12], %20 {strides = array<i32>} : memref<128x128xf32, #tpu.memory_space<vmem>>, vector<128x128xf32>,
    %c0_13 = arith.constant 0 : index
    %c0_14 = arith.constant 0 : index
    %24 = vector.load %arg6[%c0_13, %c0_14] : memref<128x1xi32, #tpu.memory_space<vmem>>, vector<128x1xi32>
    tpu.vector_store %arg6[%c0_13, %c0_14], %16 {strides = array<i32>} : memref<128x1xi32, #tpu.memory_space<vmem>>, vector<128x1xi32>,
    %25 = arith.subf %21, %0 : vector<128x32xf32>
    %26 = tpu.iota {dimensions = array<i32: 0>} : vector<128x1xi32>
    %c128_i32_15 = arith.constant 128 : i32
    %27 = arith.muli %arg0, %c128_i32_15 : i32
    %28 = vector.broadcast %27 : i32 to vector<128x1xi32>
    %29 = arith.addi %26, %28 : vector<128x1xi32>
    %c16_i32 = arith.constant 16 : i32
    %30 = vector.broadcast %c16_i32 : i32 to vector<128x1xi32>
    %31 = arith.cmpi slt, %29, %30 : vector<128x1xi32>
    %32 = arith.extui %31 : vector<128x1xi1> to vector<128x1xi32>
    %33 = arith.sitofp %32 : vector<128x1xi32> to vector<128x1xf32>
    %34 = vector.broadcast %33 : vector<128x1xf32> to vector<128x32xf32>
    %35 = arith.mulf %25, %34 : vector<128x32xf32>
    %36 = vector.broadcast %33 : vector<128x1xf32> to vector<128x128xf32>
    %37 = arith.mulf %20, %36 : vector<128x128xf32>
    %cst_16 = arith.constant dense<0.000000e+00> : vector<128xf32>
    %38 = vector.multi_reduction <add>, %37, %cst_16 [0] : vector<128x128xf32> to vector<128xf32>
    %39 = vector.shape_cast %38 : vector<128xf32> to vector<1x128xf32>
    %40 = arith.mulf %35, %35 : vector<128x32xf32>
    %41 = vector.shape_cast %40 : vector<128x32xf32> to vector<1x128x32xf32>
    %cst_17 = arith.constant dense<0.000000e+00> : vector<1xf32>
    %42 = vector.multi_reduction <add>, %41, %cst_17 [1, 2] : vector<1x128x32xf32> to vector<1xf32>
    %43 = vector.shape_cast %42 : vector<1xf32> to vector<1x1x1xf32>
    %44 = vector.extract %43[0, 0, 0] : f32 from vector<1x1x1xf32>
    %45 = vector.broadcast %44 : f32 to vector<1x1x1xf32>
    %c0_18 = arith.constant 0 : index
    %c0_19 = arith.constant 0 : index
    %c0_20 = arith.constant 0 : index
    %46 = vector.load %arg7[%c0_18, %c0_19, %c0_20] : memref<1x1x1xf32, #tpu.memory_space<vmem>>, vector<1x1x1xf32>
    tpu.vector_store %arg7[%c0_18, %c0_19, %c0_20], %45 {strides = array<i32>} : memref<1x1x1xf32, #tpu.memory_space<vmem>>, vector<1x1x1xf32>,
    %47 = vector.shape_cast %39 : vector<1x128xf32> to vector<1x1x128xf32>
    %c0_21 = arith.constant 0 : index
    %c0_22 = arith.constant 0 : index
    %c0_23 = arith.constant 0 : index
    %48 = vector.load %arg8[%c0_21, %c0_22, %c0_23] : memref<1x1x128xf32, #tpu.memory_space<vmem>>, vector<1x1x128xf32>
    tpu.vector_store %arg8[%c0_21, %c0_22, %c0_23], %47 {strides = array<i32>} : memref<1x1x128xf32, #tpu.memory_space<vmem>>, vector<1x1x128xf32>,
    return
  }
  func.func @transform_0(%arg0: i32) -> (i32, i32) {
    %c0_i32 = arith.constant 0 : i32
    %c0_i32_0 = arith.constant 0 : i32
    return %arg0, %c0_i32 : i32, i32
  }
  func.func @transform_1(%arg0: i32) -> (i32, i32) {
    %c0_i32 = arith.constant 0 : i32
    %c0_i32_0 = arith.constant 0 : i32
    %c0_i32_1 = arith.constant 0 : i32
    return %c0_i32, %c0_i32_0 : i32, i32
  }
  func.func @transform_2(%arg0: i32) -> (i32, i32) {
    %c0_i32 = arith.constant 0 : i32
    %c0_i32_0 = arith.constant 0 : i32
    %c0_i32_1 = arith.constant 0 : i32
    return %c0_i32, %c0_i32_0 : i32, i32
  }
  func.func @transform_3(%arg0: i32) -> (i32, i32) {
    %c0_i32 = arith.constant 0 : i32
    %c0_i32_0 = arith.constant 0 : i32
    return %arg0, %c0_i32 : i32, i32
  }
  func.func @transform_4(%arg0: i32) -> (i32, i32) {
    %c0_i32 = arith.constant 0 : i32
    %c0_i32_0 = arith.constant 0 : i32
    return %arg0, %c0_i32 : i32, i32
  }
  func.func @transform_5(%arg0: i32) -> (i32, i32) {
    %c0_i32 = arith.constant 0 : i32
    %c0_i32_0 = arith.constant 0 : i32
    return %arg0, %c0_i32 : i32, i32
  }
  func.func @transform_6(%arg0: i32) -> (i32, i32, i32) {
    %c0_i32 = arith.constant 0 : i32
    %c0_i32_0 = arith.constant 0 : i32
    %c0_i32_1 = arith.constant 0 : i32
    return %arg0, %c0_i32, %c0_i32_0 : i32, i32, i32
  }
  func.func @transform_7(%arg0: i32) -> (i32, i32, i32) {
    %c0_i32 = arith.constant 0 : i32
    %c0_i32_0 = arith.constant 0 : i32
    %c0_i32_1 = arith.constant 0 : i32
    return %arg0, %c0_i32, %c0_i32_0 : i32, i32, i32
  }
}

</mosaic_0001>

<llo_original>
// kernel: tpu_custom_call.1
$region0: #{tpu_custom_call.1}
  #allocation0 [shape = 'u32[]', space=smem, size = 0x4, offset = 0x4, fixed_abs, tag = 'smem constant byte address 0x4 - core index']
  #allocation1 [shape = 'u32[72,128]{1,0:T(1,128)}', space=vmem, size = 0x9000, scoped, tag = 'internal scratch']
  %s0 = inlined_call_operand.vmem [shape: f32[128,32], index: 0, kind: input, shape index: {}]
  %s1 = inlined_call_operand.vmem [shape: f32[128,32], index: 1, kind: input, shape index: {}]
  %s2 = inlined_call_operand.vmem [shape: f32[1,128], index: 2, kind: input, shape index: {}]
  %s3 = inlined_call_operand.vmem [shape: f32[128,32], index: 3, kind: output, shape index: {0}]
  %s4 = inlined_call_operand.hbm [shape: f32[128,128], index: 4, kind: output, shape index: {1}]
  %s5 = inlined_call_operand.vmem [shape: s32[128,1], index: 5, kind: output, shape index: {2}]
  %s6 = inlined_call_operand.hbm [shape: f32[1,1,1], index: 6, kind: output, shape index: {3}]
  %s7 = inlined_call_operand.hbm [shape: f32[1,1,128], index: 7, kind: output, shape index: {4}]
  %8 = xla_tuple %s3, %s4, %s5, %s6, %s7
  %s9 = sld [smem:[#allocation0]]
  $region54: #{tpu_custom_call.1} parent=0
    _
  %s11 = ssub.s32 1, %s9
  %s12 = scalar_select 0, %s11, %s9
  $region1: #{tpu_custom_call.1} parent=0
    #allocation2 [shape = 'u8[65536]{0}', space=vmem, size = 0x10000, scoped, tag = 'output window, operand 1, single buffered']
    #allocation3 [shape = 's32[1]{0}', space=sflag, size = 0x4, scoped, tag = 'scoped memory for tpu_custom_call.1']
    #allocation4 [shape = 'u8[512]{0}', space=vmem, size = 0x400, scoped, tag = 'output window, operand 3, single buffered']
    #allocation5 [shape = 's32[1]{0}', space=sflag, size = 0x4, scoped, tag = 'scoped memory for tpu_custom_call.1']
    #allocation6 [shape = 'u8[512]{0}', space=vmem, size = 0x400, scoped, tag = 'output window, operand 4, single buffered']
    %13 = vsyncpa [#allocation3], 0
    %14 = vsyncpa [#allocation5], 0
    // Predicated region
    $region2: #{tpu_custom_call.1} parent=1 // pred_check
      _
    $region3: #{tpu_custom_call.1} parent=1 // pred_check_branch
      %16 = sbr.rel (0) target = $region5
    $region4: #{tpu_custom_call.1} parent=1 // pred_region
      _
    $region5: #{tpu_custom_call.1} parent=1 // pred_fallthru
      _
    // Predicated region
    $region6: #{tpu_custom_call.1} parent=1 // pred_check
      _
    $region7: #{tpu_custom_call.1} parent=1 // pred_check_branch
      %18 = sbr.rel (0) target = $region9
    $region8: #{tpu_custom_call.1} parent=1 // pred_region
      _
    $region9: #{tpu_custom_call.1} parent=1 // pred_fallthru
      _
    // Predicated region
    $region10: #{tpu_custom_call.1} parent=1 // pred_check
      _
    $region11: #{tpu_custom_call.1} parent=1 // pred_check_branch
      %20 = sbr.rel (0) target = $region13
    $region12: #{tpu_custom_call.1} parent=1 // pred_region
      _
    $region13: #{tpu_custom_call.1} parent=1 // pred_fallthru
      _
    %v21 = vld [vmem:[%s0] sm:$0xff]
    %v22 = vld [vmem:[%s0 + $0x8] sm:$0xff]
    %v23 = vld [vmem:[%s0 + $0x10] sm:$0xff]
    %v24 = vld [vmem:[%s0 + $0x18] sm:$0xff]
    %v25 = vld [vmem:[%s0 + $0x20] sm:$0xff]
    %v26 = vld [vmem:[%s0 + $0x28] sm:$0xff]
    %v27 = vld [vmem:[%s0 + $0x30] sm:$0xff]
    %v28 = vld [vmem:[%s0 + $0x38] sm:$0xff]
    %v29 = vld [vmem:[%s0 + $0x40] sm:$0xff]
    %v30 = vld [vmem:[%s0 + $0x48] sm:$0xff]
    %v31 = vld [vmem:[%s0 + $0x50] sm:$0xff]
    %v32 = vld [vmem:[%s0 + $0x58] sm:$0xff]
    %v33 = vld [vmem:[%s0 + $0x60] sm:$0xff]
    %v34 = vld [vmem:[%s0 + $0x68] sm:$0xff]
    %v35 = vld [vmem:[%s0 + $0x70] sm:$0xff]
    %v36 = vld [vmem:[%s0 + $0x78] sm:$0xff]
    %v37 = vld [vmem:[%s1] sm:$0xff]
    %v38 = vld [vmem:[%s1 + $0x8] sm:$0xff]
    %v39 = vld [vmem:[%s1 + $0x10] sm:$0xff]
    %v40 = vld [vmem:[%s1 + $0x18] sm:$0xff]
    %v41 = vld [vmem:[%s1 + $0x20] sm:$0xff]
    %v42 = vld [vmem:[%s1 + $0x28] sm:$0xff]
    %v43 = vld [vmem:[%s1 + $0x30] sm:$0xff]
    %v44 = vld [vmem:[%s1 + $0x38] sm:$0xff]
    %v45 = vld [vmem:[%s1 + $0x40] sm:$0xff]
    %v46 = vld [vmem:[%s1 + $0x48] sm:$0xff]
    %v47 = vld [vmem:[%s1 + $0x50] sm:$0xff]
    %v48 = vld [vmem:[%s1 + $0x58] sm:$0xff]
    %v49 = vld [vmem:[%s1 + $0x60] sm:$0xff]
    %v50 = vld [vmem:[%s1 + $0x68] sm:$0xff]
    %v51 = vld [vmem:[%s1 + $0x70] sm:$0xff]
    %v52 = vld [vmem:[%s1 + $0x78] sm:$0xff]
    %v53 = vld [vmem:[%s2] sm:$0x1]
    %vm54 = vcmask 261120
    %v56 = vsel %vm54, %v21, 0
    %v59 = vsel %vm54, %v22, 0
    %v62 = vsel %vm54, %v23, 0
    %v65 = vsel %vm54, %v24, 0
    %v68 = vsel %vm54, %v25, 0
    %v71 = vsel %vm54, %v26, 0
    %v74 = vsel %vm54, %v27, 0
    %v77 = vsel %vm54, %v28, 0
    %v80 = vsel %vm54, %v29, 0
    %v83 = vsel %vm54, %v30, 0
    %v86 = vsel %vm54, %v31, 0
    %v89 = vsel %vm54, %v32, 0
    %v92 = vsel %vm54, %v33, 0
    %v95 = vsel %vm54, %v34, 0
    %v98 = vsel %vm54, %v35, 0
    %v101 = vsel %vm54, %v36, 0
    %v104 = vsel %vm54, %v37, 0
    %v107 = vsel %vm54, %v38, 0
    %v110 = vsel %vm54, %v39, 0
    %v113 = vsel %vm54, %v40, 0
    %v116 = vsel %vm54, %v41, 0
    %v119 = vsel %vm54, %v42, 0
    %v122 = vsel %vm54, %v43, 0
    %v125 = vsel %vm54, %v44, 0
    %v128 = vsel %vm54, %v45, 0
    %v131 = vsel %vm54, %v46, 0
    %v134 = vsel %vm54, %v47, 0
    %v137 = vsel %vm54, %v48, 0
    %v140 = vsel %vm54, %v49, 0
    %v143 = vsel %vm54, %v50, 0
    %v146 = vsel %vm54, %v51, 0
    %v149 = vsel %vm54, %v52, 0
    %151 = vmatpush.xpose.msra.mxu0 %v149
    %152 = vmatpush.xpose.msra.mxu0 %v146
    %153 = vmatpush.xpose.msra.mxu0 %v143
    %154 = vmatpush.xpose.msra.mxu0 %v140
    %155 = vmatpush.xpose.msra.mxu0 %v137
    %156 = vmatpush.xpose.msra.mxu0 %v134
    %157 = vmatpush.xpose.msra.mxu0 %v131
    %158 = vmatpush.xpose.msra.mxu0 %v128
    %159 = vmatpush.xpose.msra.mxu0 %v125
    %160 = vmatpush.xpose.msra.mxu0 %v122
    %161 = vmatpush.xpose.msra.mxu0 %v119
    %162 = vmatpush.xpose.msra.mxu0 %v116
    %163 = vmatpush.xpose.msra.mxu0 %v113
    %164 = vmatpush.xpose.msra.mxu0 %v110
    %165 = vmatpush.xpose.msra.mxu0 %v107
    %166 = vmatpush.xpose.msra.mxu0 %v104
    %167 = vmatmul.f32.gmra.mxu0 %v56
    %v168 = vpop.f32.mrf.mxu0
    %v169 = vadd.f32 0.0, %v168
    %170 = vmatmul.f32.gmra.mxu0 %v59
    %v171 = vpop.f32.mrf.mxu0
    %v172 = vadd.f32 0.0, %v171
    %173 = vmatmul.f32.gmra.mxu0 %v62
    %v174 = vpop.f32.mrf.mxu0
    %v175 = vadd.f32 0.0, %v174
    %176 = vmatmul.f32.gmra.mxu0 %v65
    %v177 = vpop.f32.mrf.mxu0
    %v178 = vadd.f32 0.0, %v177
    %179 = vmatmul.f32.gmra.mxu0 %v68
    %v180 = vpop.f32.mrf.mxu0
    %v181 = vadd.f32 0.0, %v180
    %182 = vmatmul.f32.gmra.mxu0 %v71
    %v183 = vpop.f32.mrf.mxu0
    %v184 = vadd.f32 0.0, %v183
    %185 = vmatmul.f32.gmra.mxu0 %v74
    %v186 = vpop.f32.mrf.mxu0
    %v187 = vadd.f32 0.0, %v186
    %188 = vmatmul.f32.gmra.mxu0 %v77
    %v189 = vpop.f32.mrf.mxu0
    %v190 = vadd.f32 0.0, %v189
    %191 = vmatmul.f32.gmra.mxu0 %v80
    %v192 = vpop.f32.mrf.mxu0
    %v193 = vadd.f32 0.0, %v192
    %194 = vmatmul.f32.gmra.mxu0 %v83
    %v195 = vpop.f32.mrf.mxu0
    %v196 = vadd.f32 0.0, %v195
    %197 = vmatmul.f32.gmra.mxu0 %v86
    %v198 = vpop.f32.mrf.mxu0
    %v199 = vadd.f32 0.0, %v198
    %200 = vmatmul.f32.gmra.mxu0 %v89
    %v201 = vpop.f32.mrf.mxu0
    %v202 = vadd.f32 0.0, %v201
    %203 = vmatmul.f32.gmra.mxu0 %v92
    %v204 = vpop.f32.mrf.mxu0
    %v205 = vadd.f32 0.0, %v204
    %206 = vmatmul.f32.gmra.mxu0 %v95
    %v207 = vpop.f32.mrf.mxu0
    %v208 = vadd.f32 0.0, %v207
    %209 = vmatmul.f32.gmra.mxu0 %v98
    %v210 = vpop.f32.mrf.mxu0
    %v211 = vadd.f32 0.0, %v210
    %212 = vmatmul.f32.gmra.mxu0 %v101
    %v213 = vpop.f32.mrf.mxu0
    %v214 = vadd.f32 0.0, %v213
    %215 = vdwg.mxu0
    %v216 = vmul.f32 %v169, 2.0
    %v217 = vmul.f32 %v172, 2.0
    %v218 = vmul.f32 %v175, 2.0
    %v219 = vmul.f32 %v178, 2.0
    %v220 = vmul.f32 %v181, 2.0
    %v221 = vmul.f32 %v184, 2.0
    %v222 = vmul.f32 %v187, 2.0
    %v223 = vmul.f32 %v190, 2.0
    %v224 = vmul.f32 %v193, 2.0
    %v225 = vmul.f32 %v196, 2.0
    %v226 = vmul.f32 %v199, 2.0
    %v227 = vmul.f32 %v202, 2.0
    %v228 = vmul.f32 %v205, 2.0
    %v229 = vmul.f32 %v208, 2.0
    %v230 = vmul.f32 %v211, 2.0
    %v231 = vmul.f32 %v214, 2.0
    %v233 = vperm.slane %v53, 0
    %v235 = vsub.f32 %v233, %v216
    %v236 = vsub.f32 %v233, %v217
    %v237 = vsub.f32 %v233, %v218
    %v238 = vsub.f32 %v233, %v219
    %v239 = vsub.f32 %v233, %v220
    %v240 = vsub.f32 %v233, %v221
    %v241 = vsub.f32 %v233, %v222
    %v242 = vsub.f32 %v233, %v223
    %v243 = vsub.f32 %v233, %v224
    %v244 = vsub.f32 %v233, %v225
    %v245 = vsub.f32 %v233, %v226
    %v246 = vsub.f32 %v233, %v227
    %v247 = vsub.f32 %v233, %v228
    %v248 = vsub.f32 %v233, %v229
    %v249 = vsub.f32 %v233, %v230
    %v250 = vsub.f32 %v233, %v231
    %v251 = vlaneseq
    %v252 = vand.u32 %v251, 127
    %253 = vmin.xlane.f32.xlu0 %v235
    %v254 = vpop.xlane.xlu0 %253
    %255 = vmin.xlane.f32.xlu0 %v236
    %v256 = vpop.xlane.xlu0 %255
    %257 = vmin.xlane.f32.xlu0 %v237
    %v258 = vpop.xlane.xlu0 %257
    %259 = vmin.xlane.f32.xlu0 %v238
    %v260 = vpop.xlane.xlu0 %259
    %261 = vmin.xlane.f32.xlu0 %v239
    %v262 = vpop.xlane.xlu0 %261
    %263 = vmin.xlane.f32.xlu0 %v240
    %v264 = vpop.xlane.xlu0 %263
    %265 = vmin.xlane.f32.xlu0 %v241
    %v266 = vpop.xlane.xlu0 %265
    %267 = vmin.xlane.f32.xlu0 %v242
    %v268 = vpop.xlane.xlu0 %267
    %269 = vmin.xlane.f32.xlu0 %v243
    %v270 = vpop.xlane.xlu0 %269
    %271 = vmin.xlane.f32.xlu0 %v244
    %v272 = vpop.xlane.xlu0 %271
    %273 = vmin.xlane.f32.xlu0 %v245
    %v274 = vpop.xlane.xlu0 %273
    %275 = vmin.xlane.f32.xlu0 %v246
    %v276 = vpop.xlane.xlu0 %275
    %277 = vmin.xlane.f32.xlu0 %v247
    %v278 = vpop.xlane.xlu0 %277
    %279 = vmin.xlane.f32.xlu0 %v248
    %v280 = vpop.xlane.xlu0 %279
    %281 = vmin.xlane.f32.xlu0 %v249
    %v282 = vpop.xlane.xlu0 %281
    %283 = vmin.xlane.f32.xlu0 %v250
    %v284 = vpop.xlane.xlu0 %283
    %vm285 = vcmp.eq.f32.partialorder %v235, %v254
    %vm286 = vcmp.eq.f32.partialorder %v236, %v256
    %vm287 = vcmp.eq.f32.partialorder %v237, %v258
    %vm288 = vcmp.eq.f32.partialorder %v238, %v260
    %vm289 = vcmp.eq.f32.partialorder %v239, %v262
    %vm290 = vcmp.eq.f32.partialorder %v240, %v264
    %vm291 = vcmp.eq.f32.partialorder %v241, %v266
    %vm292 = vcmp.eq.f32.partialorder %v242, %v268
    %vm293 = vcmp.eq.f32.partialorder %v243, %v270
    %vm294 = vcmp.eq.f32.partialorder %v244, %v272
    %vm295 = vcmp.eq.f32.partialorder %v245, %v274
    %vm296 = vcmp.eq.f32.partialorder %v246, %v276
    %vm297 = vcmp.eq.f32.partialorder %v247, %v278
    %vm298 = vcmp.eq.f32.partialorder %v248, %v280
    %vm299 = vcmp.eq.f32.partialorder %v249, %v282
    %vm300 = vcmp.eq.f32.partialorder %v250, %v284
    %v301 = vsel %vm285, %v252, 128
    %v302 = vsel %vm286, %v252, 128
    %v303 = vsel %vm287, %v252, 128
    %v304 = vsel %vm288, %v252, 128
    %v305 = vsel %vm289, %v252, 128
    %v306 = vsel %vm290, %v252, 128
    %v307 = vsel %vm291, %v252, 128
    %v308 = vsel %vm292, %v252, 128
    %v309 = vsel %vm293, %v252, 128
    %v310 = vsel %vm294, %v252, 128
    %v311 = vsel %vm295, %v252, 128
    %v312 = vsel %vm296, %v252, 128
    %v313 = vsel %vm297, %v252, 128
    %v314 = vsel %vm298, %v252, 128
    %v315 = vsel %vm299, %v252, 128
    %v316 = vsel %vm300, %v252, 128
    %v317 = vand.u32 %v301, 65535
    %v318 = vshra.s32 %v301, 16
    %v319 = vcvt.s32.f32 %v317
    %v320 = vcvt.s32.f32 %v318
    %321 = vmin.xlane.f32.xlu0 %v320
    %v322 = vpop.xlane.xlu0 %321
    %vm323 = vcmp.eq.f32.partialorder %v320, %v322
    %v324 = vsel %vm323, %v319, inf
    %325 = vmin.xlane.f32.xlu0 %v324
    %v326 = vpop.xlane.xlu0 %325
    %v327 = vcvt.f32.s32 %v326
    %v328 = vcvt.f32.s32 %v322
    %v329 = vshll.u32 %v328, 16
    %v330 = vadd.s32 %v329, %v327
    %v331 = vand.u32 %v302, 65535
    %v332 = vshra.s32 %v302, 16
    %v333 = vcvt.s32.f32 %v331
    %v334 = vcvt.s32.f32 %v332
    %335 = vmin.xlane.f32.xlu0 %v334
    %v336 = vpop.xlane.xlu0 %335
    %vm337 = vcmp.eq.f32.partialorder %v334, %v336
    %v338 = vsel %vm337, %v333, inf
    %339 = vmin.xlane.f32.xlu0 %v338
    %v340 = vpop.xlane.xlu0 %339
    %v341 = vcvt.f32.s32 %v340
    %v342 = vcvt.f32.s32 %v336
    %v343 = vshll.u32 %v342, 16
    %v344 = vadd.s32 %v343, %v341
    %v345 = vand.u32 %v303, 65535
    %v346 = vshra.s32 %v303, 16
    %v347 = vcvt.s32.f32 %v345
    %v348 = vcvt.s32.f32 %v346
    %349 = vmin.xlane.f32.xlu0 %v348
    %v350 = vpop.xlane.xlu0 %349
    %vm351 = vcmp.eq.f32.partialorder %v348, %v350
    %v352 = vsel %vm351, %v347, inf
    %353 = vmin.xlane.f32.xlu0 %v352
    %v354 = vpop.xlane.xlu0 %353
    %v355 = vcvt.f32.s32 %v354
    %v356 = vcvt.f32.s32 %v350
    %v357 = vshll.u32 %v356, 16
    %v358 = vadd.s32 %v357, %v355
    %v359 = vand.u32 %v304, 65535
    %v360 = vshra.s32 %v304, 16
    %v361 = vcvt.s32.f32 %v359
    %v362 = vcvt.s32.f32 %v360
    %363 = vmin.xlane.f32.xlu0 %v362
    %v364 = vpop.xlane.xlu0 %363
    %vm365 = vcmp.eq.f32.partialorder %v362, %v364
    %v366 = vsel %vm365, %v361, inf
    %367 = vmin.xlane.f32.xlu0 %v366
    %v368 = vpop.xlane.xlu0 %367
    %v369 = vcvt.f32.s32 %v368
    %v370 = vcvt.f32.s32 %v364
    %v371 = vshll.u32 %v370, 16
    %v372 = vadd.s32 %v371, %v369
    %v373 = vand.u32 %v305, 65535
    %v374 = vshra.s32 %v305, 16
    %v375 = vcvt.s32.f32 %v373
    %v376 = vcvt.s32.f32 %v374
    %377 = vmin.xlane.f32.xlu0 %v376
    %v378 = vpop.xlane.xlu0 %377
    %vm379 = vcmp.eq.f32.partialorder %v376, %v378
    %v380 = vsel %vm379, %v375, inf
    %381 = vmin.xlane.f32.xlu0 %v380
    %v382 = vpop.xlane.xlu0 %381
    %v383 = vcvt.f32.s32 %v382
    %v384 = vcvt.f32.s32 %v378
    %v385 = vshll.u32 %v384, 16
    %v386 = vadd.s32 %v385, %v383
    %v387 = vand.u32 %v306, 65535
    %v388 = vshra.s32 %v306, 16
    %v389 = vcvt.s32.f32 %v387
    %v390 = vcvt.s32.f32 %v388
    %391 = vmin.xlane.f32.xlu0 %v390
    %v392 = vpop.xlane.xlu0 %391
    %vm393 = vcmp.eq.f32.partialorder %v390, %v392
    %v394 = vsel %vm393, %v389, inf
    %395 = vmin.xlane.f32.xlu0 %v394
    %v396 = vpop.xlane.xlu0 %395
    %v397 = vcvt.f32.s32 %v396
    %v398 = vcvt.f32.s32 %v392
    %v399 = vshll.u32 %v398, 16
    %v400 = vadd.s32 %v399, %v397
    %v401 = vand.u32 %v307, 65535
    %v402 = vshra.s32 %v307, 16
    %v403 = vcvt.s32.f32 %v401
    %v404 = vcvt.s32.f32 %v402
    %405 = vmin.xlane.f32.xlu0 %v404
    %v406 = vpop.xlane.xlu0 %405
    %vm407 = vcmp.eq.f32.partialorder %v404, %v406
    %v408 = vsel %vm407, %v403, inf
    %409 = vmin.xlane.f32.xlu0 %v408
    %v410 = vpop.xlane.xlu0 %409
    %v411 = vcvt.f32.s32 %v410
    %v412 = vcvt.f32.s32 %v406
    %v413 = vshll.u32 %v412, 16
    %v414 = vadd.s32 %v413, %v411
    %v415 = vand.u32 %v308, 65535
    %v416 = vshra.s32 %v308, 16
    %v417 = vcvt.s32.f32 %v415
    %v418 = vcvt.s32.f32 %v416
    %419 = vmin.xlane.f32.xlu0 %v418
    %v420 = vpop.xlane.xlu0 %419
    %vm421 = vcmp.eq.f32.partialorder %v418, %v420
    %v422 = vsel %vm421, %v417, inf
    %423 = vmin.xlane.f32.xlu0 %v422
    %v424 = vpop.xlane.xlu0 %423
    %v425 = vcvt.f32.s32 %v424
    %v426 = vcvt.f32.s32 %v420
    %v427 = vshll.u32 %v426, 16
    %v428 = vadd.s32 %v427, %v425
    %v429 = vand.u32 %v309, 65535
    %v430 = vshra.s32 %v309, 16
    %v431 = vcvt.s32.f32 %v429
    %v432 = vcvt.s32.f32 %v430
    %433 = vmin.xlane.f32.xlu0 %v432
    %v434 = vpop.xlane.xlu0 %433
    %vm435 = vcmp.eq.f32.partialorder %v432, %v434
    %v436 = vsel %vm435, %v431, inf
    %437 = vmin.xlane.f32.xlu0 %v436
    %v438 = vpop.xlane.xlu0 %437
    %v439 = vcvt.f32.s32 %v438
    %v440 = vcvt.f32.s32 %v434
    %v441 = vshll.u32 %v440, 16
    %v442 = vadd.s32 %v441, %v439
    %v443 = vand.u32 %v310, 65535
    %v444 = vshra.s32 %v310, 16
    %v445 = vcvt.s32.f32 %v443
    %v446 = vcvt.s32.f32 %v444
    %447 = vmin.xlane.f32.xlu0 %v446
    %v448 = vpop.xlane.xlu0 %447
    %vm449 = vcmp.eq.f32.partialorder %v446, %v448
    %v450 = vsel %vm449, %v445, inf
    %451 = vmin.xlane.f32.xlu0 %v450
    %v452 = vpop.xlane.xlu0 %451
    %v453 = vcvt.f32.s32 %v452
    %v454 = vcvt.f32.s32 %v448
    %v455 = vshll.u32 %v454, 16
    %v456 = vadd.s32 %v455, %v453
    %v457 = vand.u32 %v311, 65535
    %v458 = vshra.s32 %v311, 16
    %v459 = vcvt.s32.f32 %v457
    %v460 = vcvt.s32.f32 %v458
    %461 = vmin.xlane.f32.xlu0 %v460
    %v462 = vpop.xlane.xlu0 %461
    %vm463 = vcmp.eq.f32.partialorder %v460, %v462
    %v464 = vsel %vm463, %v459, inf
    %465 = vmin.xlane.f32.xlu0 %v464
    %v466 = vpop.xlane.xlu0 %465
    %v467 = vcvt.f32.s32 %v466
    %v468 = vcvt.f32.s32 %v462
    %v469 = vshll.u32 %v468, 16
    %v470 = vadd.s32 %v469, %v467
    %v471 = vand.u32 %v312, 65535
    %v472 = vshra.s32 %v312, 16
    %v473 = vcvt.s32.f32 %v471
    %v474 = vcvt.s32.f32 %v472
    %475 = vmin.xlane.f32.xlu0 %v474
    %v476 = vpop.xlane.xlu0 %475
    %vm477 = vcmp.eq.f32.partialorder %v474, %v476
    %v478 = vsel %vm477, %v473, inf
    %479 = vmin.xlane.f32.xlu0 %v478
    %v480 = vpop.xlane.xlu0 %479
    %v481 = vcvt.f32.s32 %v480
    %v482 = vcvt.f32.s32 %v476
    %v483 = vshll.u32 %v482, 16
    %v484 = vadd.s32 %v483, %v481
    %v485 = vand.u32 %v313, 65535
    %v486 = vshra.s32 %v313, 16
    %v487 = vcvt.s32.f32 %v485
    %v488 = vcvt.s32.f32 %v486
    %489 = vmin.xlane.f32.xlu0 %v488
    %v490 = vpop.xlane.xlu0 %489
    %vm491 = vcmp.eq.f32.partialorder %v488, %v490
    %v492 = vsel %vm491, %v487, inf
    %493 = vmin.xlane.f32.xlu0 %v492
    %v494 = vpop.xlane.xlu0 %493
    %v495 = vcvt.f32.s32 %v494
    %v496 = vcvt.f32.s32 %v490
    %v497 = vshll.u32 %v496, 16
    %v498 = vadd.s32 %v497, %v495
    %v499 = vand.u32 %v314, 65535
    %v500 = vshra.s32 %v314, 16
    %v501 = vcvt.s32.f32 %v499
    %v502 = vcvt.s32.f32 %v500
    %503 = vmin.xlane.f32.xlu0 %v502
    %v504 = vpop.xlane.xlu0 %503
    %vm505 = vcmp.eq.f32.partialorder %v502, %v504
    %v506 = vsel %vm505, %v501, inf
    %507 = vmin.xlane.f32.xlu0 %v506
    %v508 = vpop.xlane.xlu0 %507
    %v509 = vcvt.f32.s32 %v508
    %v510 = vcvt.f32.s32 %v504
    %v511 = vshll.u32 %v510, 16
    %v512 = vadd.s32 %v511, %v509
    %v513 = vand.u32 %v315, 65535
    %v514 = vshra.s32 %v315, 16
    %v515 = vcvt.s32.f32 %v513
    %v516 = vcvt.s32.f32 %v514
    %517 = vmin.xlane.f32.xlu0 %v516
    %v518 = vpop.xlane.xlu0 %517
    %vm519 = vcmp.eq.f32.partialorder %v516, %v518
    %v520 = vsel %vm519, %v515, inf
    %521 = vmin.xlane.f32.xlu0 %v520
    %v522 = vpop.xlane.xlu0 %521
    %v523 = vcvt.f32.s32 %v522
    %v524 = vcvt.f32.s32 %v518
    %v525 = vshll.u32 %v524, 16
    %v526 = vadd.s32 %v525, %v523
    %v527 = vand.u32 %v316, 65535
    %v528 = vshra.s32 %v316, 16
    %v529 = vcvt.s32.f32 %v527
    %v530 = vcvt.s32.f32 %v528
    %531 = vmin.xlane.f32.xlu0 %v530
    %v532 = vpop.xlane.xlu0 %531
    %vm533 = vcmp.eq.f32.partialorder %v530, %v532
    %v534 = vsel %vm533, %v529, inf
    %535 = vmin.xlane.f32.xlu0 %v534
    %v536 = vpop.xlane.xlu0 %535
    %v537 = vcvt.f32.s32 %v536
    %v538 = vcvt.f32.s32 %v532
    %v539 = vshll.u32 %v538, 16
    %v540 = vadd.s32 %v539, %v537
    %vm541 = vcmp.eq.s32.totalorder %v252, %v330
    %vm542 = vcmp.eq.s32.totalorder %v252, %v344
    %vm543 = vcmp.eq.s32.totalorder %v252, %v358
    %vm544 = vcmp.eq.s32.totalorder %v252, %v372
    %vm545 = vcmp.eq.s32.totalorder %v252, %v386
    %vm546 = vcmp.eq.s32.totalorder %v252, %v400
    %vm547 = vcmp.eq.s32.totalorder %v252, %v414
    %vm548 = vcmp.eq.s32.totalorder %v252, %v428
    %vm549 = vcmp.eq.s32.totalorder %v252, %v442
    %vm550 = vcmp.eq.s32.totalorder %v252, %v456
    %vm551 = vcmp.eq.s32.totalorder %v252, %v470
    %vm552 = vcmp.eq.s32.totalorder %v252, %v484
    %vm553 = vcmp.eq.s32.totalorder %v252, %v498
    %vm554 = vcmp.eq.s32.totalorder %v252, %v512
    %vm555 = vcmp.eq.s32.totalorder %v252, %v526
    %vm556 = vcmp.eq.s32.totalorder %v252, %v540
    %v557 = vsel %vm541, 1, 0
    %v558 = vsel %vm542, 1, 0
    %v559 = vsel %vm543, 1, 0
    %v560 = vsel %vm544, 1, 0
    %v561 = vsel %vm545, 1, 0
    %v562 = vsel %vm546, 1, 0
    %v563 = vsel %vm547, 1, 0
    %v564 = vsel %vm548, 1, 0
    %v565 = vsel %vm549, 1, 0
    %v566 = vsel %vm550, 1, 0
    %v567 = vsel %vm551, 1, 0
    %v568 = vsel %vm552, 1, 0
    %v569 = vsel %vm553, 1, 0
    %v570 = vsel %vm554, 1, 0
    %v571 = vsel %vm555, 1, 0
    %v572 = vsel %vm556, 1, 0
    %v573 = vcvt.s32.f32 %v557
    %v574 = vcvt.s32.f32 %v558
    %v575 = vcvt.s32.f32 %v559
    %v576 = vcvt.s32.f32 %v560
    %v577 = vcvt.s32.f32 %v561
    %v578 = vcvt.s32.f32 %v562
    %v579 = vcvt.s32.f32 %v563
    %v580 = vcvt.s32.f32 %v564
    %v581 = vcvt.s32.f32 %v565
    %v582 = vcvt.s32.f32 %v566
    %v583 = vcvt.s32.f32 %v567
    %v584 = vcvt.s32.f32 %v568
    %v585 = vcvt.s32.f32 %v569
    %v586 = vcvt.s32.f32 %v570
    %v587 = vcvt.s32.f32 %v571
    %v588 = vcvt.s32.f32 %v572
    %589 = vmatpush.msra.mxu0 %v52
    %590 = vmatpush.msra.mxu0 %v51
    %591 = vmatpush.msra.mxu0 %v50
    %592 = vmatpush.msra.mxu0 %v49
    %593 = vmatpush.msra.mxu0 %v48
    %594 = vmatpush.msra.mxu0 %v47
    %595 = vmatpush.msra.mxu0 %v46
    %596 = vmatpush.msra.mxu0 %v45
    %597 = vmatpush.msra.mxu0 %v44
    %598 = vmatpush.msra.mxu0 %v43
    %599 = vmatpush.msra.mxu0 %v42
    %600 = vmatpush.msra.mxu0 %v41
    %601 = vmatpush.msra.mxu0 %v40
    %602 = vmatpush.msra.mxu0 %v39
    %603 = vmatpush.msra.mxu0 %v38
    %604 = vmatpush.msra.mxu0 %v37
    %605 = vmatmul.f32.gmra.mxu0 %v573
    %v606 = vpop.f32.mrf.mxu0
    %v607 = vadd.f32 0.0, %v606
    %608 = vmatmul.f32.gmra.mxu0 %v574
    %v609 = vpop.f32.mrf.mxu0
    %v610 = vadd.f32 0.0, %v609
    %611 = vmatmul.f32.gmra.mxu0 %v575
    %v612 = vpop.f32.mrf.mxu0
    %v613 = vadd.f32 0.0, %v612
    %614 = vmatmul.f32.gmra.mxu0 %v576
    %v615 = vpop.f32.mrf.mxu0
    %v616 = vadd.f32 0.0, %v615
    %617 = vmatmul.f32.gmra.mxu0 %v577
    %v618 = vpop.f32.mrf.mxu0
    %v619 = vadd.f32 0.0, %v618
    %620 = vmatmul.f32.gmra.mxu0 %v578
    %v621 = vpop.f32.mrf.mxu0
    %v622 = vadd.f32 0.0, %v621
    %623 = vmatmul.f32.gmra.mxu0 %v579
    %v624 = vpop.f32.mrf.mxu0
    %v625 = vadd.f32 0.0, %v624
    %626 = vmatmul.f32.gmra.mxu0 %v580
    %v627 = vpop.f32.mrf.mxu0
    %v628 = vadd.f32 0.0, %v627
    %629 = vmatmul.f32.gmra.mxu0 %v581
    %v630 = vpop.f32.mrf.mxu0
    %v631 = vadd.f32 0.0, %v630
    %632 = vmatmul.f32.gmra.mxu0 %v582
    %v633 = vpop.f32.mrf.mxu0
    %v634 = vadd.f32 0.0, %v633
    %635 = vmatmul.f32.gmra.mxu0 %v583
    %v636 = vpop.f32.mrf.mxu0
    %v637 = vadd.f32 0.0, %v636
    %638 = vmatmul.f32.gmra.mxu0 %v584
    %v639 = vpop.f32.mrf.mxu0
    %v640 = vadd.f32 0.0, %v639
    %641 = vmatmul.f32.gmra.mxu0 %v585
    %v642 = vpop.f32.mrf.mxu0
    %v643 = vadd.f32 0.0, %v642
    %644 = vmatmul.f32.gmra.mxu0 %v586
    %v645 = vpop.f32.mrf.mxu0
    %v646 = vadd.f32 0.0, %v645
    %647 = vmatmul.f32.gmra.mxu0 %v587
    %v648 = vpop.f32.mrf.mxu0
    %v649 = vadd.f32 0.0, %v648
    %650 = vmatmul.f32.gmra.mxu0 %v588
    %v651 = vpop.f32.mrf.mxu0
    %v652 = vadd.f32 0.0, %v651
    %653 = vdwg.mxu0
    %654 = vst.msk [vmem:[%s3] sm:$0xff] %vm54, %v607
    %655 = vst.msk [vmem:[%s3 + $0x8] sm:$0xff] %vm54, %v610
    %656 = vst.msk [vmem:[%s3 + $0x10] sm:$0xff] %vm54, %v613
    %657 = vst.msk [vmem:[%s3 + $0x18] sm:$0xff] %vm54, %v616
    %658 = vst.msk [vmem:[%s3 + $0x20] sm:$0xff] %vm54, %v619
    %659 = vst.msk [vmem:[%s3 + $0x28] sm:$0xff] %vm54, %v622
    %660 = vst.msk [vmem:[%s3 + $0x30] sm:$0xff] %vm54, %v625
    %661 = vst.msk [vmem:[%s3 + $0x38] sm:$0xff] %vm54, %v628
    %662 = vst.msk [vmem:[%s3 + $0x40] sm:$0xff] %vm54, %v631
    %663 = vst.msk [vmem:[%s3 + $0x48] sm:$0xff] %vm54, %v634
    %664 = vst.msk [vmem:[%s3 + $0x50] sm:$0xff] %vm54, %v637
    %665 = vst.msk [vmem:[%s3 + $0x58] sm:$0xff] %vm54, %v640
    %666 = vst.msk [vmem:[%s3 + $0x60] sm:$0xff] %vm54, %v643
    %667 = vst.msk [vmem:[%s3 + $0x68] sm:$0xff] %vm54, %v646
    %668 = vst.msk [vmem:[%s3 + $0x70] sm:$0xff] %vm54, %v649
    %669 = vst.msk [vmem:[%s3 + $0x78] sm:$0xff] %vm54, %v652
    %670 = vst [vmem:[#allocation2] sm:$0xff] %v573
    %671 = vst [vmem:[#allocation2 + $0x8] sm:$0xff] %v574
    %672 = vst [vmem:[#allocation2 + $0x10] sm:$0xff] %v575
    %673 = vst [vmem:[#allocation2 + $0x18] sm:$0xff] %v576
    %674 = vst [vmem:[#allocation2 + $0x20] sm:$0xff] %v577
    %675 = vst [vmem:[#allocation2 + $0x28] sm:$0xff] %v578
    %676 = vst [vmem:[#allocation2 + $0x30] sm:$0xff] %v579
    %677 = vst [vmem:[#allocation2 + $0x38] sm:$0xff] %v580
    %678 = vst [vmem:[#allocation2 + $0x40] sm:$0xff] %v581
    %679 = vst [vmem:[#allocation2 + $0x48] sm:$0xff] %v582
    %680 = vst [vmem:[#allocation2 + $0x50] sm:$0xff] %v583
    %681 = vst [vmem:[#allocation2 + $0x58] sm:$0xff] %v584
    %682 = vst [vmem:[#allocation2 + $0x60] sm:$0xff] %v585
    %683 = vst [vmem:[#allocation2 + $0x68] sm:$0xff] %v586
    %684 = vst [vmem:[#allocation2 + $0x70] sm:$0xff] %v587
    %685 = vst [vmem:[#allocation2 + $0x78] sm:$0xff] %v588
    %vm686 = vcmask 7168
    %687 = vst.msk [vmem:[%s5] sm:$0xff] %vm686, %v330
    %688 = vst.msk [vmem:[%s5 + $0x8] sm:$0xff] %vm686, %v344
    %689 = vst.msk [vmem:[%s5 + $0x10] sm:$0xff] %vm686, %v358
    %690 = vst.msk [vmem:[%s5 + $0x18] sm:$0xff] %vm686, %v372
    %691 = vst.msk [vmem:[%s5 + $0x20] sm:$0xff] %vm686, %v386
    %692 = vst.msk [vmem:[%s5 + $0x28] sm:$0xff] %vm686, %v400
    %693 = vst.msk [vmem:[%s5 + $0x30] sm:$0xff] %vm686, %v414
    %694 = vst.msk [vmem:[%s5 + $0x38] sm:$0xff] %vm686, %v428
    %695 = vst.msk [vmem:[%s5 + $0x40] sm:$0xff] %vm686, %v442
    %696 = vst.msk [vmem:[%s5 + $0x48] sm:$0xff] %vm686, %v456
    %697 = vst.msk [vmem:[%s5 + $0x50] sm:$0xff] %vm686, %v470
    %698 = vst.msk [vmem:[%s5 + $0x58] sm:$0xff] %vm686, %v484
    %699 = vst.msk [vmem:[%s5 + $0x60] sm:$0xff] %vm686, %v498
    %700 = vst.msk [vmem:[%s5 + $0x68] sm:$0xff] %vm686, %v512
    %701 = vst.msk [vmem:[%s5 + $0x70] sm:$0xff] %vm686, %v526
    %702 = vst.msk [vmem:[%s5 + $0x78] sm:$0xff] %vm686, %v540
    %v703 = vsub.f32 %v607, %v21
    %v704 = vsub.f32 %v610, %v22
    %v705 = vsub.f32 %v613, %v23
    %v706 = vsub.f32 %v616, %v24
    %v707 = vsub.f32 %v619, %v25
    %v708 = vsub.f32 %v622, %v26
    %v709 = vsub.f32 %v625, %v27
    %v710 = vsub.f32 %v628, %v28
    %v711 = vsub.f32 %v631, %v29
    %v712 = vsub.f32 %v634, %v30
    %v713 = vsub.f32 %v637, %v31
    %v714 = vsub.f32 %v640, %v32
    %v715 = vsub.f32 %v643, %v33
    %v716 = vsub.f32 %v646, %v34
    %v717 = vsub.f32 %v649, %v35
    %v718 = vsub.f32 %v652, %v36
    %v719 = vlaneseq
    %v720 = vshrl.u32 %v719, 7
    %v721 = vadd.s32 %v720, 8
    %v722 = vadd.s32 %v720, 16
    %v723 = vadd.s32 %v720, 24
    %v724 = vadd.s32 %v720, 32
    %v725 = vadd.s32 %v720, 40
    %v726 = vadd.s32 %v720, 48
    %v727 = vadd.s32 %v720, 56
    %v728 = vadd.s32 %v720, 64
    %v729 = vadd.s32 %v720, 72
    %v730 = vadd.s32 %v720, 80
    %v731 = vadd.s32 %v720, 88
    %v732 = vadd.s32 %v720, 96
    %v733 = vadd.s32 %v720, 104
    %v734 = vadd.s32 %v720, 112
    %v735 = vadd.s32 %v720, 120
    %s736 = smul.u32 0, 128
    %v737 = vstv %s736
    %v738 = vadd.s32 %v720, %v737
    %v739 = vadd.s32 %v721, %v737
    %v740 = vadd.s32 %v722, %v737
    %v741 = vadd.s32 %v723, %v737
    %v742 = vadd.s32 %v724, %v737
    %v743 = vadd.s32 %v725, %v737
    %v744 = vadd.s32 %v726, %v737
    %v745 = vadd.s32 %v727, %v737
    %v746 = vadd.s32 %v728, %v737
    %v747 = vadd.s32 %v729, %v737
    %v748 = vadd.s32 %v730, %v737
    %v749 = vadd.s32 %v731, %v737
    %v750 = vadd.s32 %v732, %v737
    %v751 = vadd.s32 %v733, %v737
    %v752 = vadd.s32 %v734, %v737
    %v753 = vadd.s32 %v735, %v737
    %vm754 = vcmp.lt.s32.totalorder %v738, 16
    %vm755 = vcmp.lt.s32.totalorder %v739, 16
    %vm756 = vcmp.lt.s32.totalorder %v740, 16
    %vm757 = vcmp.lt.s32.totalorder %v741, 16
    %vm758 = vcmp.lt.s32.totalorder %v742, 16
    %vm759 = vcmp.lt.s32.totalorder %v743, 16
    %vm760 = vcmp.lt.s32.totalorder %v744, 16
    %vm761 = vcmp.lt.s32.totalorder %v745, 16
    %vm762 = vcmp.lt.s32.totalorder %v746, 16
    %vm763 = vcmp.lt.s32.totalorder %v747, 16
    %vm764 = vcmp.lt.s32.totalorder %v748, 16
    %vm765 = vcmp.lt.s32.totalorder %v749, 16
    %vm766 = vcmp.lt.s32.totalorder %v750, 16
    %vm767 = vcmp.lt.s32.totalorder %v751, 16
    %vm768 = vcmp.lt.s32.totalorder %v752, 16
    %vm769 = vcmp.lt.s32.totalorder %v753, 16
    %v770 = vsel %vm754, 1, 0
    %v771 = vsel %vm755, 1, 0
    %v772 = vsel %vm756, 1, 0
    %v773 = vsel %vm757, 1, 0
    %v774 = vsel %vm758, 1, 0
    %v775 = vsel %vm759, 1, 0
    %v776 = vsel %vm760, 1, 0
    %v777 = vsel %vm761, 1, 0
    %v778 = vsel %vm762, 1, 0
    %v779 = vsel %vm763, 1, 0
    %v780 = vsel %vm764, 1, 0
    %v781 = vsel %vm765, 1, 0
    %v782 = vsel %vm766, 1, 0
    %v783 = vsel %vm767, 1, 0
    %v784 = vsel %vm768, 1, 0
    %v785 = vsel %vm769, 1, 0
    %v786 = vcvt.s32.f32 %v770
    %v787 = vcvt.s32.f32 %v771
    %v788 = vcvt.s32.f32 %v772
    %v789 = vcvt.s32.f32 %v773
    %v790 = vcvt.s32.f32 %v774
    %v791 = vcvt.s32.f32 %v775
    %v792 = vcvt.s32.f32 %v776
    %v793 = vcvt.s32.f32 %v777
    %v794 = vcvt.s32.f32 %v778
    %v795 = vcvt.s32.f32 %v779
    %v796 = vcvt.s32.f32 %v780
    %v797 = vcvt.s32.f32 %v781
    %v798 = vcvt.s32.f32 %v782
    %v799 = vcvt.s32.f32 %v783
    %v800 = vcvt.s32.f32 %v784
    %v801 = vcvt.s32.f32 %v785
    %v802 = vmul.f32 %v703, %v786
    %v803 = vmul.f32 %v704, %v787
    %v804 = vmul.f32 %v705, %v788
    %v805 = vmul.f32 %v706, %v789
    %v806 = vmul.f32 %v707, %v790
    %v807 = vmul.f32 %v708, %v791
    %v808 = vmul.f32 %v709, %v792
    %v809 = vmul.f32 %v710, %v793
    %v810 = vmul.f32 %v711, %v794
    %v811 = vmul.f32 %v712, %v795
    %v812 = vmul.f32 %v713, %v796
    %v813 = vmul.f32 %v714, %v797
    %v814 = vmul.f32 %v715, %v798
    %v815 = vmul.f32 %v716, %v799
    %v816 = vmul.f32 %v717, %v800
    %v817 = vmul.f32 %v718, %v801
    %v818 = vmul.f32 %v573, %v786
    %v819 = vmul.f32 %v574, %v787
    %v820 = vmul.f32 %v575, %v788
    %v821 = vmul.f32 %v576, %v789
    %v822 = vmul.f32 %v577, %v790
    %v823 = vmul.f32 %v578, %v791
    %v824 = vmul.f32 %v579, %v792
    %v825 = vmul.f32 %v580, %v793
    %v826 = vmul.f32 %v581, %v794
    %v827 = vmul.f32 %v582, %v795
    %v828 = vmul.f32 %v583, %v796
    %v829 = vmul.f32 %v584, %v797
    %v830 = vmul.f32 %v585, %v798
    %v831 = vmul.f32 %v586, %v799
    %v832 = vmul.f32 %v587, %v800
    %v833 = vmul.f32 %v588, %v801
    %v834 = vadd.f32 %v818, %v819
    %v835 = vadd.f32 %v834, %v820
    %v836 = vadd.f32 %v835, %v821
    %v837 = vadd.f32 %v836, %v822
    %v838 = vadd.f32 %v837, %v823
    %v839 = vadd.f32 %v838, %v824
    %v840 = vadd.f32 %v839, %v825
    %v841 = vadd.f32 %v840, %v826
    %v842 = vadd.f32 %v841, %v827
    %v843 = vadd.f32 %v842, %v828
    %v844 = vadd.f32 %v843, %v829
    %v845 = vadd.f32 %v844, %v830
    %v846 = vadd.f32 %v845, %v831
    %v847 = vadd.f32 %v846, %v832
    %v848 = vadd.f32 %v847, %v833
    %v849 = vrot.slane %v848, 4
    %v850 = vadd.f32 %v848, %v849
    %v851 = vrot.slane %v850, 2
    %v852 = vadd.f32 %v850, %v851
    %v853 = vrot.slane %v852, 1
    %v854 = vadd.f32 %v852, %v853
    %v855 = vmul.f32 %v802, %v802
    %v856 = vmul.f32 %v803, %v803
    %v857 = vmul.f32 %v804, %v804
    %v858 = vmul.f32 %v805, %v805
    %v859 = vmul.f32 %v806, %v806
    %v860 = vmul.f32 %v807, %v807
    %v861 = vmul.f32 %v808, %v808
    %v862 = vmul.f32 %v809, %v809
    %v863 = vmul.f32 %v810, %v810
    %v864 = vmul.f32 %v811, %v811
    %v865 = vmul.f32 %v812, %v812
    %v866 = vmul.f32 %v813, %v813
    %v867 = vmul.f32 %v814, %v814
    %v868 = vmul.f32 %v815, %v815
    %v869 = vmul.f32 %v816, %v816
    %v870 = vmul.f32 %v817, %v817
    %v871 = vsel %vm54, %v855, 0.0
    %v872 = vsel %vm54, %v856, 0.0
    %v873 = vadd.f32 %v871, %v872
    %v874 = vsel %vm54, %v857, 0.0
    %v875 = vadd.f32 %v873, %v874
    %v876 = vsel %vm54, %v858, 0.0
    %v877 = vadd.f32 %v875, %v876
    %v878 = vsel %vm54, %v859, 0.0
    %v879 = vadd.f32 %v877, %v878
    %v880 = vsel %vm54, %v860, 0.0
    %v881 = vadd.f32 %v879, %v880
    %v882 = vsel %vm54, %v861, 0.0
    %v883 = vadd.f32 %v881, %v882
    %v884 = vsel %vm54, %v862, 0.0
    %v885 = vadd.f32 %v883, %v884
    %v886 = vsel %vm54, %v863, 0.0
    %v887 = vadd.f32 %v885, %v886
    %v888 = vsel %vm54, %v864, 0.0
    %v889 = vadd.f32 %v887, %v888
    %v890 = vsel %vm54, %v865, 0.0
    %v891 = vadd.f32 %v889, %v890
    %v892 = vsel %vm54, %v866, 0.0
    %v893 = vadd.f32 %v891, %v892
    %v894 = vsel %vm54, %v867, 0.0
    %v895 = vadd.f32 %v893, %v894
    %v896 = vsel %vm54, %v868, 0.0
    %v897 = vadd.f32 %v895, %v896
    %v898 = vsel %vm54, %v869, 0.0
    %v899 = vadd.f32 %v897, %v898
    %v900 = vsel %vm54, %v870, 0.0
    %v901 = vadd.f32 %v899, %v900
    %902 = vadd.xlane.f32.xlu0 %v901
    %v903 = vpop.xlane.xlu0 %902
    %v904 = vrot.slane %v903, 4
    %v905 = vadd.f32 %v903, %v904
    %v906 = vrot.slane %v905, 2
    %v907 = vadd.f32 %v905, %v906
    %v908 = vrot.slane %v907, 1
    %v909 = vadd.f32 %v907, %v908
    %s910 = vtos %v909
    %v911 = vstv %s910
    %vm912 = vcmask 0
    %913 = vst.msk [vmem:[#allocation4] sm:$0x1] %vm912, %v911
    %914 = vst [vmem:[#allocation6] sm:$0x1] %v854
    // Predicated region
    $region14: #{tpu_custom_call.1} parent=1 // pred_check
      _
    $region15: #{tpu_custom_call.1} parent=1 // pred_check_branch
      %916 = sbr.rel (0) target = $region17
    $region16: #{tpu_custom_call.1} parent=1 // pred_region
      _
    $region17: #{tpu_custom_call.1} parent=1 // pred_fallthru
      _
    // Predicated region
    $region18: #{tpu_custom_call.1} parent=1 // pred_check
      _
    $region19: #{tpu_custom_call.1} parent=1 // pred_check_branch
      %918 = sbr.rel (0) target = $region21
    $region20: #{tpu_custom_call.1} parent=1 // pred_region
      %920 = vsyncadd [#allocation3], 0
      %s921 = sshll.u32 [#allocation2], 4
      %s922 = int_to_ptr.vmem [resolvable:$true] %s921
      %s923 = sshll.u32 %s4, 4
      %s924 = int_to_ptr.hbm [resolvable:$true] %s923
      %929 = dma.vmem_to_hbm [thread:$0]  %s922, 2048, %s924, [#allocation3], 128, 128, 8
    $region21: #{tpu_custom_call.1} parent=1 // pred_fallthru
      _
    // Predicated region
    $region22: #{tpu_custom_call.1} parent=1 // pred_check
      _
    $region23: #{tpu_custom_call.1} parent=1 // pred_check_branch
      %931 = sbr.rel (0) target = $region25
    $region24: #{tpu_custom_call.1} parent=1 // pred_region
      _
    $region25: #{tpu_custom_call.1} parent=1 // pred_fallthru
      _
    // Predicated region
    $region26: #{tpu_custom_call.1} parent=1 // pred_check
      _
    $region27: #{tpu_custom_call.1} parent=1 // pred_check_branch
      %933 = sbr.rel (0) target = $region29
    $region28: #{tpu_custom_call.1} parent=1 // pred_region
      %935 = vsyncadd [#allocation5], 0
      %s937 = sshll.u32 [#allocation4], 4
      %s938 = int_to_ptr.vmem [resolvable:$true] %s937
      %s939 = sshll.u32 %s6, 4
      %s940 = int_to_ptr.hbm [resolvable:$true] %s939
      %942 = dma.vmem_to_hbm [thread:$0]  %s938, 16, %s940, [#allocation5]
    $region29: #{tpu_custom_call.1} parent=1 // pred_fallthru
      _
    // Predicated region
    $region30: #{tpu_custom_call.1} parent=1 // pred_check
      _
    $region31: #{tpu_custom_call.1} parent=1 // pred_check_branch
      %944 = sbr.rel (0) target = $region33
    $region32: #{tpu_custom_call.1} parent=1 // pred_region
      %946 = vsyncadd [#allocation5], 0
      %s948 = sshll.u32 [#allocation6], 4
      %s949 = int_to_ptr.vmem [resolvable:$true] %s948
      %s950 = sshll.u32 %s7, 4
      %s951 = int_to_ptr.hbm [resolvable:$true] %s950
      %953 = dma.vmem_to_hbm [thread:$0]  %s949, 16, %s951, [#allocation5]
    $region33: #{tpu_custom_call.1} parent=1 // pred_fallthru
      _
    // Predicated region
    $region34: #{tpu_custom_call.1} parent=1 // pred_check
      _
    $region35: #{tpu_custom_call.1} parent=1 // pred_check_branch
      %955 = sbr.rel (0) target = $region37
    $region36: #{tpu_custom_call.1} parent=1 // pred_region
      _
    $region37: #{tpu_custom_call.1} parent=1 // pred_fallthru
      _
    // Predicated region
    $region38: #{tpu_custom_call.1} parent=1 // pred_check
      _
    $region39: #{tpu_custom_call.1} parent=1 // pred_check_branch
      %957 = sbr.rel (0) target = $region41
    $region40: #{tpu_custom_call.1} parent=1 // pred_region
      %959 = dma.done [#allocation3], 2048
    $region41: #{tpu_custom_call.1} parent=1 // pred_fallthru
      _
    // Predicated region
    $region42: #{tpu_custom_call.1} parent=1 // pred_check
      _
    $region43: #{tpu_custom_call.1} parent=1 // pred_check_branch
      %961 = sbr.rel (0) target = $region45
    $region44: #{tpu_custom_call.1} parent=1 // pred_region
      _
    $region45: #{tpu_custom_call.1} parent=1 // pred_fallthru
      _
    // Predicated region
    $region46: #{tpu_custom_call.1} parent=1 // pred_check
      _
    $region47: #{tpu_custom_call.1} parent=1 // pred_check_branch
      %963 = sbr.rel (0) target = $region49
    $region48: #{tpu_custom_call.1} parent=1 // pred_region
      %965 = dma.done [#allocation5], 16
    $region49: #{tpu_custom_call.1} parent=1 // pred_fallthru
      _
    // Predicated region
    $region50: #{tpu_custom_call.1} parent=1 // pred_check
      _
    $region51: #{tpu_custom_call.1} parent=1 // pred_check_branch
      %967 = sbr.rel (0) target = $region53
    $region52: #{tpu_custom_call.1} parent=1 // pred_region
      %969 = dma.done [#allocation5], 16
    $region53: #{tpu_custom_call.1} parent=1 // pred_fallthru
      _
    %970 = vsyncpa [#allocation3], 1
    %971 = vsyncpa [#allocation5], 1

</llo_original>
